<compile_context>
chip_gen: v6e
topology: v6e:2x2x1
jax: 0.10.0
libtpu: 0.0.40
codegen_flags: <defaults>
</compile_context>

<pallas_src>
import math

import jax
import jax.numpy as jnp
from jax.experimental import pallas as pl
from jax.experimental.pallas import tpu as pltpu


def _sublane_multiple(dtype) -> int:
    """Sublane packing multiple for a dtype: 8 (4B), 16 (2B), 32 (1B)."""
    itemsize = jnp.dtype(dtype).itemsize
    return max(8, 32 // max(itemsize, 1))


def _aligned_window(full, out, off, gran):
    """Pick a DMA window (block, block_index, residual_offset) for one dim.

    Blocked BlockSpec indexing can only place a block at offset index*block,
    so we search for the smallest `block` (a multiple of `gran`, staying in
    bounds) whose placement covers [off, off + out).  The leftover unaligned
    part of the crop (`residual`) is finished by an in-kernel static slice.
    Falls back to the full dim (always legal) when no smaller window fits.
    """
    full, out, off, gran = int(full), int(out), int(off), int(gran)
    if out == full:
        return full, 0, 0
    block = ((out + gran - 1) // gran) * gran
    while block < full:
        idx = off // block
        start = idx * block
        if (off - start) + out <= block and start + block <= full:
            return block, idx, off - start
        block += gran
    return full, 0, off


def _padded_slice_bytes(dims, sublane, itemsize):
    """Tiled VMEM footprint of one (spatial) slice: (sublane,128) padding."""
    dims = [int(d) for d in dims]
    padded = list(dims[:-2]) + [
        -(-dims[-2] // sublane) * sublane,
        -(-dims[-1] // 128) * 128,
    ]
    return math.prod(padded) * itemsize


def _make_crop_kernel(residuals, out_dims):
    """Kernel copying the (residual-offset) crop of each slice in the chunk."""
    idx = (slice(None),) + tuple(
        pl.ds(int(r), int(s)) for r, s in zip(residuals, out_dims)
    )

    def crop_kernel(x_ref, o_ref):
        o_ref[...] = x_ref[idx]

    return crop_kernel


def crop_img_tensor(x, size):
    """Center-crops an NCHW (or NCDHW) array to spatial `size`."""
    assert x.ndim in (4, 5), "Invalid input array dimension"
    assert len(size) in (2, 3), "Invalid input depth dimension"
    assert x.ndim - 2 == len(size), "size rank must match spatial rank of x"

    spatial = tuple(int(d) for d in x.shape[2:])
    out_dims = tuple(int(s) for s in size)
    if any(xs < os for xs, os in zip(spatial, out_dims)):
        raise ValueError(f"trying to crop from size {spatial} to size {out_dims}")

    # Centered crop offsets (torch: pad = x - out, low = pad // 2).
    offsets = tuple((xs - os) // 2 for xs, os in zip(spatial, out_dims))

    if spatial == out_dims:
        return x  # nothing to crop

    N, C = int(x.shape[0]), int(x.shape[1])
    nc = N * C
    xr = x.reshape((nc,) + spatial)  # collapsing leading dims is layout-free

    dtype = x.dtype
    itemsize = jnp.dtype(dtype).itemsize
    sublane = _sublane_multiple(dtype)
    n_sp = len(spatial)

    # --- DMA-level (aligned) crop window per spatial dim --------------------
    grans = [1] * (n_sp - 2) + [sublane, 128]
    blocks, block_idx, residuals = [], [], []
    for d in range(n_sp):
        if d == n_sp - 1 and out_dims[d] * itemsize < 512:
            # Keep full-width contiguous rows on the read side; short strided
            # rows tank DMA efficiency (especially v5e). Crop W in-kernel.
            b, i, r = spatial[d], 0, offsets[d]
        else:
            b, i, r = _aligned_window(spatial[d], out_dims[d], offsets[d], grans[d])
        blocks.append(b)
        block_idx.append(i)
        residuals.append(r)
    blocks = tuple(blocks)
    block_idx = tuple(block_idx)
    residuals = tuple(residuals)

    # --- chunk sizing from the *tiled* VMEM footprint ------------------------
    in_slice = _padded_slice_bytes(blocks, sublane, itemsize)
    out_slice = _padded_slice_bytes(out_dims, sublane, itemsize)
    per_slice = 2 * (in_slice + out_slice)  # double-buffered in + out

    try:
        vmem_cap = int(pltpu.get_tpu_info().vmem_capacity_bytes)
    except Exception:
        vmem_cap = 64 << 20  # conservative: v7x per-core VMEM
    budget = max(8 << 20, vmem_cap // 3)

    chunk = max(1, budget // max(per_slice, 1))
    chunk = min(chunk, nc)

    # >= 4 grid steps when possible (>= 2 per TensorCore on dual-core chips).
    if nc >= 4:
        chunk = min(chunk, pl.cdiv(nc, 4))
    chunk = max(1, chunk)

    # Prefer a chunk that divides nc so the last block is not mostly padding.
    best_div = 1
    i = 1
    while i * i <= nc:
        if nc % i == 0:
            for d in (i, nc // i):
                if d <= chunk and d > best_div:
                    best_div = d
        i += 1
    if best_div * 2 > chunk:
        chunk = best_div

    steps = pl.cdiv(nc, chunk)
    grid = (steps,)

    in_block = (chunk,) + blocks
    out_block = (chunk,) + out_dims
    in_tail = tuple(int(b) for b in block_idx)
    out_tail = (0,) * n_sp
    in_index_map = lambda i: (i,) + in_tail
    out_index_map = lambda i: (i,) + out_tail

    vmem_needed = chunk * per_slice
    vmem_limit = int(min(vmem_cap, max(32 << 20, vmem_needed + (4 << 20))))

    kernel = _make_crop_kernel(residuals, out_dims)

    out = pl.pallas_call(
        kernel,
        out_shape=jax.ShapeDtypeStruct((nc,) + out_dims, dtype),
        grid_spec=pltpu.PrefetchScalarGridSpec(
            num_scalar_prefetch=0,
            grid=grid,
            in_specs=[pl.BlockSpec(in_block, in_index_map)],
            out_specs=pl.BlockSpec(out_block, out_index_map),
        ),
        compiler_params=pltpu.CompilerParams(
            dimension_semantics=("parallel",),
            vmem_limit_bytes=vmem_limit,
        ),
    )(xr)
    return out.reshape((N, C) + out_dims)


class CropImage:
    """Crops an image (NCHW / NCDHW) to the given spatial size."""

    def __init__(self, size):
        self.size = tuple(size)

    def __call__(self, x):
        return crop_img_tensor(x, self.size)


if __name__ == "__main__":
    key = jax.random.PRNGKey(0)
    k4, k5 = jax.random.split(key)

    # 4-D: batch=2, channels=4, spatial 16x16 -> center crop to 8x8.
    x = jax.random.normal(k4, (2, 4, 16, 16), dtype=jnp.float32)
    size = (8, 8)
    out = jax.block_until_ready(CropImage(size)(x))

    H, W = x.shape[2], x.shape[3]
    top, left = (H - size[0]) // 2, (W - size[1]) // 2
    ref = x[:, :, top:top + size[0], left:left + size[1]]
    assert out.shape == (2, 4, 8, 8), out.shape
    assert jnp.array_equal(out, ref), "4-D mismatch with reference crop"

    # 5-D: batch=2, channels=3, spatial 6x16x16 -> center crop to 4x8x8.
    x5 = jax.random.normal(k5, (2, 3, 6, 16, 16), dtype=jnp.float32)
    size5 = (4, 8, 8)
    out5 = jax.block_until_ready(CropImage(size5)(x5))

    D5, H5, W5 = x5.shape[2:]
    fr = (D5 - size5[0]) // 2
    t5 = (H5 - size5[1]) // 2
    l5 = (W5 - size5[2]) // 2
    ref5 = x5[:, :, fr:fr + size5[0], t5:t5 + size5[1], l5:l5 + size5[2]]
    assert out5.shape == (2, 3, 4, 8, 8), out5.shape
    assert jnp.array_equal(out5, ref5), "5-D mismatch with reference crop"

    print("KERNEL_OK")
</pallas_src>

<mosaic_0001>
module attributes {stable_mosaic.version = 11 : i64} {
  func.func @crop_kernel(%arg0: i32, %arg1: memref<2x16x16xf32, #tpu.memory_space<vmem>>, %arg2: memref<2x8x8xf32, #tpu.memory_space<vmem>>) attributes {dimension_semantics = [#tpu.dimension_semantics<parallel>], iteration_bounds = array<i64: 4>, scalar_prefetch = 0 : i64, scratch_operands = 0 : i64, tpu.core_type = #tpu.core_type<tc>, window_params = [{transform_indices = @transform_0, window_bounds = array<i64: 2, 16, 16>}, {transform_indices = @transform_1, window_bounds = array<i64: 2, 8, 8>}]} {
    %c0 = arith.constant 0 : index
    %c4 = arith.constant 4 : index
    %c4_0 = arith.constant 4 : index
    %0 = vector.load %arg1[%c0, %c4, %c4_0] : memref<2x16x16xf32, #tpu.memory_space<vmem>>, vector<2x8x8xf32>
    %c0_1 = arith.constant 0 : index
    %c0_2 = arith.constant 0 : index
    %c0_3 = arith.constant 0 : index
    %1 = vector.load %arg2[%c0_1, %c0_2, %c0_3] : memref<2x8x8xf32, #tpu.memory_space<vmem>>, vector<2x8x8xf32>
    tpu.vector_store %arg2[%c0_1, %c0_2, %c0_3], %0 {strides = array<i32>} : memref<2x8x8xf32, #tpu.memory_space<vmem>>, vector<2x8x8xf32>,
    return
  }
  func.func @transform_0(%arg0: i32) -> (i32, i32, i32) {
    %c0_i32 = arith.constant 0 : i32
    %c0_i32_0 = arith.constant 0 : i32
    %c0_i32_1 = arith.constant 0 : i32
    return %arg0, %c0_i32, %c0_i32_0 : i32, i32, i32
  }
  func.func @transform_1(%arg0: i32) -> (i32, i32, i32) {
    %c0_i32 = arith.constant 0 : i32
    %c0_i32_0 = arith.constant 0 : i32
    %c0_i32_1 = arith.constant 0 : i32
    return %arg0, %c0_i32, %c0_i32_0 : i32, i32, i32
  }
}

</mosaic_0001>

<llo_original>
// kernel: tpu_custom_call.1
$region0: #{tpu_custom_call.1}
  #allocation0 [shape = 'u32[]', space=smem, size = 0x4, offset = 0x4, fixed_abs, tag = 'smem constant byte address 0x4 - core index']
  #allocation1 [shape = 'u32[144,128]{1,0:T(1,128)}', space=vmem, size = 0x12000, scoped, tag = 'internal scratch']
  %s0 = inlined_call_operand.hbm [shape: f32[8,16,16], index: 0, kind: input, shape index: {}]
  %s1 = inlined_call_operand.hbm [shape: f32[8,8,8], index: 1, kind: output, shape index: {}]
  %s2 = sld [smem:[#allocation0]]
  $region41: #{tpu_custom_call.1} parent=0
    _
  %s4 = ssub.s32 1, %s2
  %s5 = scalar_select 0, %s4, %s2
  $region1: #{tpu_custom_call.1} parent=0
    #allocation2 [shape = 'u8[32768]{0}', space=vmem, size = 0x8000, scoped, tag = 'input window, operand 0']
    #allocation3 [shape = 's32[2]{0}', space=sflag, size = 0x8, scoped, tag = 'scoped memory for tpu_custom_call.1']
    #allocation4 [shape = 's32[2]{0}', space=sflag, size = 0x8, scoped, tag = 'scoped memory for tpu_custom_call.1']
    #allocation5 [shape = 'u8[16384]{0}', space=vmem, size = 0x4000, scoped, tag = 'output window, operand 0']
    %6 = vsyncpa [#allocation3], 0
    %s7 = scalar_lea.sflag [#allocation3], 1
    %8 = vsyncpa %s7, 0
    %9 = vsyncpa [#allocation4], 0
    %s10 = scalar_lea.sflag [#allocation4], 1
    %11 = vsyncpa %s10, 0
    loop: start=0, step=1, limit=6
    $region2: #{tpu_custom_call.1} parent=1 // loop_pre_header
      _
    $region3: #{tpu_custom_call.1} parent=1 // loop_header
      %s13 = sphi 0, %s17
      %p14 = scmp.ge.s32.totalorder %s13, 6
      %s23 = sphi 0, %s25
      %s26 = sphi 0, %s23
      %s27 = sphi 0, %s26
      %s43 = sphi 0, %s27
      %s49 = sphi 0, %s51
      %s52 = sphi 0, %s49
      %s53 = sphi 0, %s52
      %s69 = sphi 0, %s53
    $region4: #{tpu_custom_call.1} parent=1 // loop_header_branch
      %16 = sbr.rel (%p14) target = $region8
    $region5: #{tpu_custom_call.1} parent=1 // loop_body
      %s18 = ssub.s32 %s13, 1
      %s19 = ssub.s32 %s13, 2
      %s20 = sadd.s32 %s13, 1
      %s21 = ssub.s32 %s13, %s20
      %p22 = scmp.eq.s32.totalorder %s21, 0
      %s24 = sadd.s32 %s23, 1
      %s25 = scalar_select %p22, %s23, %s24
      %p28 = pneg %p22
      %p29 = scmp.eq.s32.totalorder %s13, 3
      %p30 = por %p28, %p29
      %p31 = scmp.ne.s32.totalorder %s23, %s26
      %p32 = scmp.eq.s32.totalorder %s13, 0
      %p33 = por %p31, %p32
      %p34 = scmp.ne.s32.totalorder %s23, %s26
      %p35 = scmp.eq.s32.totalorder %s18, 3
      %p36 = por %p34, %p35
      %p37 = scmp.ne.s32.totalorder %s26, %s27
      %p38 = scmp.eq.s32.totalorder %s18, 0
      %p39 = por %p37, %p38
      %p40 = scmp.ne.s32.totalorder %s26, %s27
      %p41 = scmp.eq.s32.totalorder %s19, 3
      %p42 = por %p40, %p41
      %p44 = scmp.ne.s32.totalorder %s27, %s43
      %p45 = scmp.eq.s32.totalorder %s19, 0
      %p46 = por %p44, %p45
      %s47 = ssub.s32 %s13, %s20
      %p48 = scmp.eq.s32.totalorder %s47, 0
      %s50 = sadd.s32 %s49, 1
      %s51 = scalar_select %p48, %s49, %s50
      %p54 = pneg %p48
      %p55 = scmp.eq.s32.totalorder %s13, 3
      %p56 = por %p54, %p55
      %p57 = scmp.ne.s32.totalorder %s49, %s52
      %p58 = scmp.eq.s32.totalorder %s13, 0
      %p59 = por %p57, %p58
      %p60 = scmp.ne.s32.totalorder %s49, %s52
      %p61 = scmp.eq.s32.totalorder %s18, 3
      %p62 = por %p60, %p61
      %p63 = scmp.ne.s32.totalorder %s52, %s53
      %p64 = scmp.eq.s32.totalorder %s18, 0
      %p65 = por %p63, %p64
      %p66 = scmp.ne.s32.totalorder %s52, %s53
      %p67 = scmp.eq.s32.totalorder %s19, 3
      %p68 = por %p66, %p67
      %p70 = scmp.ne.s32.totalorder %s53, %s69
      %p71 = scmp.eq.s32.totalorder %s19, 0
      %p72 = por %p70, %p71
      %p73 = scmp.le.s32.totalorder 1, %s13
      %p74 = scmp.lt.s32.totalorder %s13, 5
      %p75 = pnand %p73, %p74
      %p76 = pneg %p75
      // Predicated region
      $region9: #{tpu_custom_call.1} parent=5 // pred_check
        _
      $region10: #{tpu_custom_call.1} parent=5 // pred_check_branch
        %78 = sbr.rel (%p75) target = $region12
      $region11: #{tpu_custom_call.1} parent=5 // pred_region
        %s79 = ssub.s32 %s13, 1
      $region12: #{tpu_custom_call.1} parent=5 // pred_fallthru
        _
      %p80 = scmp.lt.s32.totalorder %s13, 4
      // Predicated region
      $region13: #{tpu_custom_call.1} parent=5 // pred_check
        %p81 = pneg %p80
      $region14: #{tpu_custom_call.1} parent=5 // pred_check_branch
        %83 = sbr.rel (%p81) target = $region16
      $region15: #{tpu_custom_call.1} parent=5 // pred_region
        // Predicated region
        $region17: #{tpu_custom_call.1} parent=15 // pred_check
          %p84 = pneg %p33
        $region18: #{tpu_custom_call.1} parent=15 // pred_check_branch
          %86 = sbr.rel (%p84) target = $region20
        $region19: #{tpu_custom_call.1} parent=15 // pred_region
          %s87 = sand.u32 %s23, 1
          %s88 = scalar_lea.sflag [#allocation3], %s87
          %s89 = sand.u32 %s23, 1
          %s90 = smul.addr %s89, 32
          %s91 = scalar_lea.vmem [#allocation2], %s90
          %s92 = smul.u32 2, %s13
          %s94 = ssub.s32 512, 512
          %95 = vsyncadd %s88, %s94
          %s96 = smul.addr %s92, 2
          %s97 = smul.addr %s96, 128
          %s98 = scalar_lea.hbm %s0, %s97
          %s99 = sshll.u32 %s91, 4
          %s100 = int_to_ptr.vmem [resolvable:$true] %s99
          %105 = dma.hbm_to_vmem [thread:$0]  %s98, 512, %s100, %s88, 128, 128, 8
        $region20: #{tpu_custom_call.1} parent=15 // pred_fallthru
          _
      $region16: #{tpu_custom_call.1} parent=5 // pred_fallthru
        _
      %p106 = scmp.le.s32.totalorder 1, %s13
      %p107 = scmp.lt.s32.totalorder %s13, 5
      %p108 = pnand %p106, %p107
      %p109 = pneg %p108
      // Predicated region
      $region21: #{tpu_custom_call.1} parent=5 // pred_check
        _
      $region22: #{tpu_custom_call.1} parent=5 // pred_check_branch
        %111 = sbr.rel (%p108) target = $region24
      $region23: #{tpu_custom_call.1} parent=5 // pred_region
        %s112 = ssub.s32 %s13, 1
        %s113 = sand.u32 %s26, 1
        %s114 = scalar_lea.sflag [#allocation3], %s113
        %s115 = sand.u32 %s26, 1
        %s116 = smul.addr %s115, 32
        %s117 = scalar_lea.vmem [#allocation2], %s116
        // Predicated region
        $region25: #{tpu_custom_call.1} parent=23 // pred_check
          %p118 = pneg %p39
        $region26: #{tpu_custom_call.1} parent=23 // pred_check_branch
          %120 = sbr.rel (%p118) target = $region28
        $region27: #{tpu_custom_call.1} parent=23 // pred_region
          %121 = dma.done %s114, 512
        $region28: #{tpu_custom_call.1} parent=23 // pred_fallthru
          _
        %s122 = sand.u32 %s26, 1
        %s123 = scalar_lea.sflag [#allocation3], %s122
        %s124 = sand.u32 %s26, 1
        %s125 = smul.addr %s124, 32
        %s126 = scalar_lea.vmem [#allocation2], %s125
        %p127 = pneg %p39
        %p128 = pneg %p36
        %p129 = pneg %p65
        %p130 = pneg %p62
        %s131 = sand.u32 %s52, 1
        %s132 = scalar_lea.sflag [#allocation4], %s131
        %s133 = sand.u32 %s52, 1
        %s134 = smul.addr %s133, 16
        %s135 = scalar_lea.vmem [#allocation5], %s134
        %s136 = smul.u32 2, %s18
        %s137 = smul.u32 2, %s18
        %v138 = vld [vmem:[%s117 + $0x4] sm:$0xff]
        %v139 = vld [vmem:[%s117 + $0x14] sm:$0xff]
        %142 = vrot.lane.b32.xlu0 %v138, 124
        %v143 = vpop.permute.xlu0 %142
        %144 = vrot.lane.b32.xlu0 %v139, 124
        %v145 = vpop.permute.xlu0 %144
        %vm148 = vcmask 64512
        %149 = vst.msk [vmem:[%s135] sm:$0xff] %vm148, %v143
        %150 = vst.msk [vmem:[%s135 + $0x8] sm:$0xff] %vm148, %v145
        %s151 = sand.u32 %s52, 1
        %s152 = scalar_lea.sflag [#allocation4], %s151
        %s153 = sand.u32 %s52, 1
        %s154 = smul.addr %s153, 16
        %s155 = scalar_lea.vmem [#allocation5], %s154
        // Predicated region
        $region29: #{tpu_custom_call.1} parent=23 // pred_check
          %p156 = pneg %p62
        $region30: #{tpu_custom_call.1} parent=23 // pred_check_branch
          %158 = sbr.rel (%p156) target = $region32
        $region31: #{tpu_custom_call.1} parent=23 // pred_region
          %s159 = smul.u32 2, %s18
          %s161 = ssub.s32 256, 256
          %162 = vsyncadd %s152, %s161
          %s163 = smul.addr %s159, 128
          %s164 = scalar_lea.hbm %s1, %s163
          %s165 = sshll.u32 %s155, 4
          %s166 = int_to_ptr.vmem [resolvable:$true] %s165
          %171 = dma.vmem_to_hbm [thread:$0]  %s166, 256, %s164, %s152, 128, 128, 8
        $region32: #{tpu_custom_call.1} parent=23 // pred_fallthru
          _
      $region24: #{tpu_custom_call.1} parent=5 // pred_fallthru
        _
      %p172 = scmp.le.s32.totalorder 2, %s13
      // Predicated region
      $region33: #{tpu_custom_call.1} parent=5 // pred_check
        %p173 = pneg %p172
      $region34: #{tpu_custom_call.1} parent=5 // pred_check_branch
        %175 = sbr.rel (%p173) target = $region36
      $region35: #{tpu_custom_call.1} parent=5 // pred_region
        %s176 = ssub.s32 %s13, 2
        // Predicated region
        $region37: #{tpu_custom_call.1} parent=35 // pred_check
          %p177 = pneg %p68
        $region38: #{tpu_custom_call.1} parent=35 // pred_check_branch
          %179 = sbr.rel (%p177) target = $region40
        $region39: #{tpu_custom_call.1} parent=35 // pred_region
          %s180 = sand.u32 %s53, 1
          %s181 = scalar_lea.sflag [#allocation4], %s180
          %s182 = sand.u32 %s53, 1
          %s183 = smul.addr %s182, 16
          %s184 = scalar_lea.vmem [#allocation5], %s183
          %185 = dma.done %s181, 256
        $region40: #{tpu_custom_call.1} parent=35 // pred_fallthru
          _
      $region36: #{tpu_custom_call.1} parent=5 // pred_fallthru
        _
    $region6: #{tpu_custom_call.1} parent=1 // loop_footer
      %s17 = sadd.s32 1, %s13
    $region7: #{tpu_custom_call.1} parent=1 // loop_footer_branch
      %12 = sbr.rel target = $region3
    $region8: #{tpu_custom_call.1} parent=1 // loop_exit
      _
    %186 = vsyncpa [#allocation3], 1
    %s187 = scalar_lea.sflag [#allocation3], 1
    %188 = vsyncpa %s187, 1
    %189 = vsyncpa [#allocation4], 1
    %s190 = scalar_lea.sflag [#allocation4], 1
    %191 = vsyncpa %s190, 1

</llo_original>
